<compile_context>
chip_gen: v7x
topology: tpu7x:2x2x1
jax: 0.10.0
libtpu: 0.0.40
codegen_flags: <defaults>
</compile_context>

<pallas_src>
import functools

import jax
import jax.numpy as jnp
from jax.experimental import pallas as pl
from jax.experimental.pallas import tpu as pltpu


# Conservative VMEM budget that fits the default scoped-VMEM limit on
# v5e / v6e / v7x without needing vmem_limit_bytes overrides.
_VMEM_BUDGET_BYTES = 16 * 1024 * 1024


# ----------------------------- Pallas kernel -------------------------------

def _mlp_block_kernel(*refs, n_weights, relu_flags):
    """Fused x @ W1 -> ReLU -> ... -> x @ Wn on whole-array VMEM blocks.

    refs = (x_ref, w_ref_0, ..., w_ref_{n-1}, o_ref); weights are (in, out).
    All matmuls run in the weights' dtype (bf16 -> native MXU path) with f32
    accumulation; ReLU and the final cast happen in f32.
    """
    x_ref = refs[0]
    w_refs = refs[1:1 + n_weights]
    o_ref = refs[1 + n_weights]

    h = x_ref[...]
    for w_ref, relu in zip(w_refs, relu_flags):
        h = jnp.dot(
            h.astype(w_ref.dtype), w_ref[...],
            preferred_element_type=jnp.float32,
        )
        if relu:
            h = jnp.maximum(h, 0.0)   # ReLU in f32 (safe on v5e's f32-only VPU)
    o_ref[...] = h.astype(o_ref.dtype)


def _mlp_pallas(x, weights_t, relu_flags):
    """Run a (sub-)stack of Linear(+ReLU) layers as a single pallas_call.

    x:          (B, K0) activations.
    weights_t:  list of (K_i, K_{i+1}) weights, already transposed to (in, out).
    relu_flags: per-layer bool, True => fuse ReLU after that matmul.
    """
    n_w = len(weights_t)
    out_features = weights_t[-1].shape[1]
    kernel = functools.partial(
        _mlp_block_kernel, n_weights=n_w, relu_flags=tuple(relu_flags)
    )
    vmem_spec = pl.BlockSpec(memory_space=pltpu.MemorySpace.VMEM)
    return pl.pallas_call(
        kernel,
        out_shape=jax.ShapeDtypeStruct((x.shape[0], out_features), x.dtype),
        in_specs=[vmem_spec] * (1 + n_w),
        out_specs=vmem_spec,
    )(x, *weights_t)


def _fused_vmem_bytes(x, weights_t):
    """Rough VMEM footprint estimate for the fused whole-MLP kernel."""
    total = x.size * x.dtype.itemsize
    for w in weights_t:
        total += w.size * w.dtype.itemsize
    widths = [x.shape[1]] + [w.shape[1] for w in weights_t]
    # f32 intermediates / accumulator (keep a 2x cushion).
    total += x.shape[0] * max(widths) * 4 * 2
    return total


# ------------------------------- DNN module --------------------------------

def init_dnn_params(key, layers, std=0.01, dtype=jnp.float32):
    """'uniform' init matching torch.nn.init.uniform_(-std/2, std/2).

    Returns weights in PyTorch Linear layout (out_features, in_features).
    """
    weights = []
    for i in range(len(layers) - 1):
        key, sub = jax.random.split(key)
        w = jax.random.uniform(
            sub,
            (layers[i + 1], layers[i]),
            minval=-std / 2.0,
            maxval=std / 2.0,
            dtype=dtype,
        )
        weights.append(w)
    return weights


def prepare_params(weights, param_dtype=jnp.bfloat16):
    """One-time transform: PyTorch (out, in) -> (in, out), cast to param_dtype.

    Done once outside the forward hot path so the per-call HBM weight
    transpose of the previous version disappears.
    """
    return [jnp.asarray(w.T, dtype=param_dtype) for w in weights]


def dnn_forward(x_nchw, weights_t):
    """Forward pass of DNN (default config: no bias, no norm, ReLU hidden act).

    x_nchw:    (B, C, H, W) input (NCHW like PyTorch); Flatten -> (B, C*H*W).
    weights_t: list of (in, out) weights from prepare_params().
    """
    B = x_nchw.shape[0]
    x = x_nchw.reshape(B, -1)           # nn.Flatten

    n = len(weights_t)
    relu_flags = tuple(i < n - 1 for i in range(n))

    if _fused_vmem_bytes(x, weights_t) <= _VMEM_BUDGET_BYTES:
        # Fast path: the whole MLP in one kernel, weights + hidden activations
        # resident in VMEM, intermediate activations never written to HBM.
        return _mlp_pallas(x, weights_t, relu_flags)

    # Fallback: one whole-block pallas_call per layer (still no grid, no
    # per-call transpose).  Activations round-trip HBM between layers.
    # TODO(synk): add a K/N-tiled weight-streaming path (and a v7x two-core
    # parallel split over output features) for layers too large for VMEM.
    out = x
    for i, w_t in enumerate(weights_t):
        if _fused_vmem_bytes(out, [w_t]) > _VMEM_BUDGET_BYTES:
            raise NotImplementedError(
                "single layer exceeds the VMEM budget; tiled path not implemented"
            )
        out = _mlp_pallas(out, [w_t], (relu_flags[i],))
    return out

# TODO(synk): dropout / batchnorm / layernorm / alternative activations of the
# PyTorch module are not exercised by the default config and not implemented.


# ---------------------------------- main ------------------------------------

if __name__ == "__main__":
    key = jax.random.PRNGKey(0)

    # Shapes consistent with the module's Flatten + Linear stack:
    #   x: (2, 4, 16, 16)  ->  flatten -> 1024 features
    #   layers = [1024, 256, 128]
    layers = [1024, 256, 128]
    B, C, H, W = 2, 4, 16, 16
    assert C * H * W == layers[0]

    key, kx = jax.random.split(key)
    x = jax.random.normal(kx, (B, C, H, W), dtype=jnp.float32)

    weights = init_dnn_params(key, layers, std=0.01)            # torch (out, in) f32
    weights_t = prepare_params(weights, param_dtype=jnp.bfloat16)  # (in, out) bf16, once

    fwd = jax.jit(dnn_forward)
    out = jax.block_until_ready(fwd(x, weights_t))

    # Pure-JAX reference with identical math (same bf16 weights, bf16 MXU
    # inputs, f32 accumulation), no Pallas.
    ref = x.reshape(B, -1)
    for i, w_t in enumerate(weights_t):
        ref = jnp.dot(ref.astype(w_t.dtype), w_t,
                      preferred_element_type=jnp.float32)
        if i < len(weights_t) - 1:
            ref = jnp.maximum(ref, 0.0)

    assert out.shape == (B, layers[-1])
    assert out.dtype == jnp.float32
    assert jnp.allclose(out, ref, atol=1e-5, rtol=1e-5)

    print("KERNEL_OK")
</pallas_src>

<mosaic_0001>
module attributes {stable_mosaic.version = 11 : i64} {
  func.func @_mlp_block_kernel(%arg0: memref<2x1024xf32, #tpu.memory_space<vmem>>, %arg1: memref<1024x256xbf16, #tpu.memory_space<vmem>>, %arg2: memref<256x128xbf16, #tpu.memory_space<vmem>>, %arg3: memref<2x128xf32, #tpu.memory_space<vmem>>) attributes {dimension_semantics = [], scalar_prefetch = 0 : i64, scratch_operands = 0 : i64, tpu.core_type = #tpu.core_type<tc>} {
    %c0 = arith.constant 0 : index
    %c0_0 = arith.constant 0 : index
    %0 = vector.load %arg0[%c0, %c0_0] : memref<2x1024xf32, #tpu.memory_space<vmem>>, vector<2x1024xf32>
    %1 = arith.truncf %0 : vector<2x1024xf32> to vector<2x1024xbf16>
    %c0_1 = arith.constant 0 : index
    %c0_2 = arith.constant 0 : index
    %2 = vector.load %arg1[%c0_1, %c0_2] : memref<1024x256xbf16, #tpu.memory_space<vmem>>, vector<1024x256xbf16>
    %cst = arith.constant dense<0.000000e+00> : vector<2x256xf32>
    %3 = tpu.matmul %1, %2, %cst {dimension_numbers = #tpu.dot_dimension_numbers<[1], [0], [0], [1], [0, 0, 1, 1], [], []>} : vector<2x1024xbf16>, vector<1024x256xbf16>, vector<2x256xf32> -> vector<2x256xf32>
    %cst_3 = arith.constant 0.000000e+00 : f32
    %4 = vector.broadcast %cst_3 : f32 to vector<2x256xf32>
    %5 = arith.maximumf %3, %4 : vector<2x256xf32>
    %6 = arith.truncf %5 : vector<2x256xf32> to vector<2x256xbf16>
    %c0_4 = arith.constant 0 : index
    %c0_5 = arith.constant 0 : index
    %7 = vector.load %arg2[%c0_4, %c0_5] : memref<256x128xbf16, #tpu.memory_space<vmem>>, vector<256x128xbf16>
    %cst_6 = arith.constant dense<0.000000e+00> : vector<2x128xf32>
    %8 = tpu.matmul %6, %7, %cst_6 {dimension_numbers = #tpu.dot_dimension_numbers<[1], [0], [0], [1], [0, 0, 1, 1], [], []>} : vector<2x256xbf16>, vector<256x128xbf16>, vector<2x128xf32> -> vector<2x128xf32>
    %c0_7 = arith.constant 0 : index
    %c0_8 = arith.constant 0 : index
    %9 = vector.load %arg3[%c0_7, %c0_8] : memref<2x128xf32, #tpu.memory_space<vmem>>, vector<2x128xf32>
    tpu.vector_store %arg3[%c0_7, %c0_8], %8 {strides = array<i32>} : memref<2x128xf32, #tpu.memory_space<vmem>>, vector<2x128xf32>,
    return
  }
}

</mosaic_0001>

<llo_original>
// kernel: dnn_forward.1
$region0: #{dnn_forward.1}
  #allocation0 [shape = 'u32[]', space=smem, size = 0x4, offset = 0x4, fixed_abs, tag = 'smem constant byte address 0x4 - core index']
  #allocation1 [shape = 'u32[144,128]{1,0:T(1,128)}', space=vmem, size = 0x12000, scoped, tag = 'internal scratch']
  %s0 = inlined_call_operand.vmem [shape: f32[2,1024], index: 0, kind: input, shape index: {}]
  %s1 = inlined_call_operand.hbm [shape: bf16[1024,256], index: 1, kind: input, shape index: {}]
  %s2 = inlined_call_operand.vmem [shape: bf16[256,128], index: 2, kind: input, shape index: {}]
  %s3 = inlined_call_operand.hbm [shape: f32[2,128], index: 3, kind: output, shape index: {}]
  %s4 = sld [smem:[#allocation0]]
  $region26: #{dnn_forward.1} parent=0
    _
  %s6 = ssub.s32 1, %s4
  %s7 = scalar_select 0, %s6, %s4
  $region1: #{dnn_forward.1} parent=0
    #allocation2 [shape = 'u8[524288]{0}', space=vmem, size = 0x80000, scoped, tag = 'input window, operand 1, single buffered']
    #allocation3 [shape = 's32[1]{0}', space=sflag, size = 0x4, scoped, tag = 'scoped memory for dnn_forward.1']
    #allocation4 [shape = 's32[1]{0}', space=sflag, size = 0x4, scoped, tag = 'scoped memory for dnn_forward.1']
    #allocation5 [shape = 'u8[1024]{0}', space=vmem, size = 0x400, scoped, tag = 'output window, operand 0, single buffered']
    %8 = vsyncpa [#allocation3], 0
    %9 = vsyncpa [#allocation4], 0
    // Predicated region
    $region2: #{dnn_forward.1} parent=1 // pred_check
      _
    $region3: #{dnn_forward.1} parent=1 // pred_check_branch
      %11 = sbr.rel (0) target = $region5
    $region4: #{dnn_forward.1} parent=1 // pred_region
      _
    $region5: #{dnn_forward.1} parent=1 // pred_fallthru
      _
    // Predicated region
    $region6: #{dnn_forward.1} parent=1 // pred_check
      _
    $region7: #{dnn_forward.1} parent=1 // pred_check_branch
      %13 = sbr.rel (0) target = $region9
    $region8: #{dnn_forward.1} parent=1 // pred_region
      %s15 = ssub.s32 16384, 16384
      %16 = vsyncadd [#allocation3], %s15
      %s17 = sshll.u32 [#allocation2], 4
      %s18 = int_to_ptr.vmem [resolvable:$true] %s17
      %23 = dma.hbm_to_vmem [thread:$0]  %s1, 16384, %s18, [#allocation3], 128, 128, 8
    $region9: #{dnn_forward.1} parent=1 // pred_fallthru
      _
    // Predicated region
    $region10: #{dnn_forward.1} parent=1 // pred_check
      _
    $region11: #{dnn_forward.1} parent=1 // pred_check_branch
      %25 = sbr.rel (0) target = $region13
    $region12: #{dnn_forward.1} parent=1 // pred_region
      _
    $region13: #{dnn_forward.1} parent=1 // pred_fallthru
      _
    // Predicated region
    $region14: #{dnn_forward.1} parent=1 // pred_check
      _
    $region15: #{dnn_forward.1} parent=1 // pred_check_branch
      %27 = sbr.rel (0) target = $region17
    $region16: #{dnn_forward.1} parent=1 // pred_region
      %28 = dma.done [#allocation3], 16384
    $region17: #{dnn_forward.1} parent=1 // pred_fallthru
      _
    %v30 = vld [vmem:[%s0] sm:$0xff]
    %v31 = vld [vmem:[%s0 + $0x8] sm:$0xff]
    %v34 = vcombine.high %v30, %v30
    %v36 = vunpack.c.l.s4 1983009808
    %v37 = vunpack.c.0.s8 %v36
    %v38 = vlaneseq
    %v39 = vshrl.u32 %v38, 7
    %v40 = vsub.s32 %v37, %v39
    %v41 = vrot.slane %v30, %v40
    %v43 = vunpack.c.l.s4 1983009808
    %v44 = vunpack.c.0.s8 %v43
    %v45 = vlaneseq
    %v46 = vshrl.u32 %v45, 7
    %v47 = vsub.s32 %v44, %v46
    %v48 = vrot.slane %v34, %v47
    %v49 = vcombine.high %v41, %v41
    %v50 = vcombine.high %v48, %v48
    %v51 = vcombine.high %v31, %v31
    %v53 = vunpack.c.l.s4 1983009808
    %v54 = vunpack.c.0.s8 %v53
    %v55 = vlaneseq
    %v56 = vshrl.u32 %v55, 7
    %v57 = vsub.s32 %v54, %v56
    %v58 = vrot.slane %v31, %v57
    %v60 = vunpack.c.l.s4 1983009808
    %v61 = vunpack.c.0.s8 %v60
    %v62 = vlaneseq
    %v63 = vshrl.u32 %v62, 7
    %v64 = vsub.s32 %v61, %v63
    %v65 = vrot.slane %v51, %v64
    %v66 = vcombine.high %v58, %v58
    %v67 = vcombine.high %v65, %v65
    %v76 = vpack.c.bf16 %v41, %v41
    %v77 = vpack.c.bf16 %v49, %v49
    %v78 = vpack.c.bf16 %v48, %v48
    %v79 = vpack.c.bf16 %v50, %v50
    %v80 = vpack.c.bf16 %v58, %v58
    %v81 = vpack.c.bf16 %v66, %v66
    %v82 = vpack.c.bf16 %v65, %v65
    %v83 = vpack.c.bf16 %v67, %v67
    %v84 = vld [vmem:[#allocation2] sm:$0xff]
    %v85 = vld [vmem:[#allocation2 + $0x8] sm:$0xff]
    %v86 = vld [vmem:[#allocation2 + $0x10] sm:$0xff]
    %v87 = vld [vmem:[#allocation2 + $0x18] sm:$0xff]
    %v88 = vld [vmem:[#allocation2 + $0x20] sm:$0xff]
    %v89 = vld [vmem:[#allocation2 + $0x28] sm:$0xff]
    %v90 = vld [vmem:[#allocation2 + $0x30] sm:$0xff]
    %v91 = vld [vmem:[#allocation2 + $0x38] sm:$0xff]
    %v92 = vld [vmem:[#allocation2 + $0x40] sm:$0xff]
    %v93 = vld [vmem:[#allocation2 + $0x48] sm:$0xff]
    %v94 = vld [vmem:[#allocation2 + $0x50] sm:$0xff]
    %v95 = vld [vmem:[#allocation2 + $0x58] sm:$0xff]
    %v96 = vld [vmem:[#allocation2 + $0x60] sm:$0xff]
    %v97 = vld [vmem:[#allocation2 + $0x68] sm:$0xff]
    %v98 = vld [vmem:[#allocation2 + $0x70] sm:$0xff]
    %v99 = vld [vmem:[#allocation2 + $0x78] sm:$0xff]
    %v100 = vld [vmem:[#allocation2 + $0x80] sm:$0xff]
    %v101 = vld [vmem:[#allocation2 + $0x88] sm:$0xff]
    %v102 = vld [vmem:[#allocation2 + $0x90] sm:$0xff]
    %v103 = vld [vmem:[#allocation2 + $0x98] sm:$0xff]
    %v104 = vld [vmem:[#allocation2 + $0xa0] sm:$0xff]
    %v105 = vld [vmem:[#allocation2 + $0xa8] sm:$0xff]
    %v106 = vld [vmem:[#allocation2 + $0xb0] sm:$0xff]
    %v107 = vld [vmem:[#allocation2 + $0xb8] sm:$0xff]
    %v108 = vld [vmem:[#allocation2 + $0xc0] sm:$0xff]
    %v109 = vld [vmem:[#allocation2 + $0xc8] sm:$0xff]
    %v110 = vld [vmem:[#allocation2 + $0xd0] sm:$0xff]
    %v111 = vld [vmem:[#allocation2 + $0xd8] sm:$0xff]
    %v112 = vld [vmem:[#allocation2 + $0xe0] sm:$0xff]
    %v113 = vld [vmem:[#allocation2 + $0xe8] sm:$0xff]
    %v114 = vld [vmem:[#allocation2 + $0xf0] sm:$0xff]
    %v115 = vld [vmem:[#allocation2 + $0xf8] sm:$0xff]
    %v116 = vld [vmem:[#allocation2 + $0x100] sm:$0xff]
    %v117 = vld [vmem:[#allocation2 + $0x108] sm:$0xff]
    %v118 = vld [vmem:[#allocation2 + $0x110] sm:$0xff]
    %v119 = vld [vmem:[#allocation2 + $0x118] sm:$0xff]
    %v120 = vld [vmem:[#allocation2 + $0x120] sm:$0xff]
    %v121 = vld [vmem:[#allocation2 + $0x128] sm:$0xff]
    %v122 = vld [vmem:[#allocation2 + $0x130] sm:$0xff]
    %v123 = vld [vmem:[#allocation2 + $0x138] sm:$0xff]
    %v124 = vld [vmem:[#allocation2 + $0x140] sm:$0xff]
    %v125 = vld [vmem:[#allocation2 + $0x148] sm:$0xff]
    %v126 = vld [vmem:[#allocation2 + $0x150] sm:$0xff]
    %v127 = vld [vmem:[#allocation2 + $0x158] sm:$0xff]
    %v128 = vld [vmem:[#allocation2 + $0x160] sm:$0xff]
    %v129 = vld [vmem:[#allocation2 + $0x168] sm:$0xff]
    %v130 = vld [vmem:[#allocation2 + $0x170] sm:$0xff]
    %v131 = vld [vmem:[#allocation2 + $0x178] sm:$0xff]
    %v132 = vld [vmem:[#allocation2 + $0x180] sm:$0xff]
    %v133 = vld [vmem:[#allocation2 + $0x188] sm:$0xff]
    %v134 = vld [vmem:[#allocation2 + $0x190] sm:$0xff]
    %v135 = vld [vmem:[#allocation2 + $0x198] sm:$0xff]
    %v136 = vld [vmem:[#allocation2 + $0x1a0] sm:$0xff]
    %v137 = vld [vmem:[#allocation2 + $0x1a8] sm:$0xff]
    %v138 = vld [vmem:[#allocation2 + $0x1b0] sm:$0xff]
    %v139 = vld [vmem:[#allocation2 + $0x1b8] sm:$0xff]
    %v140 = vld [vmem:[#allocation2 + $0x1c0] sm:$0xff]
    %v141 = vld [vmem:[#allocation2 + $0x1c8] sm:$0xff]
    %v142 = vld [vmem:[#allocation2 + $0x1d0] sm:$0xff]
    %v143 = vld [vmem:[#allocation2 + $0x1d8] sm:$0xff]
    %v144 = vld [vmem:[#allocation2 + $0x1e0] sm:$0xff]
    %v145 = vld [vmem:[#allocation2 + $0x1e8] sm:$0xff]
    %v146 = vld [vmem:[#allocation2 + $0x1f0] sm:$0xff]
    %v147 = vld [vmem:[#allocation2 + $0x1f8] sm:$0xff]
    %v148 = vld [vmem:[#allocation2 + $0x200] sm:$0xff]
    %v149 = vld [vmem:[#allocation2 + $0x208] sm:$0xff]
    %v150 = vld [vmem:[#allocation2 + $0x210] sm:$0xff]
    %v151 = vld [vmem:[#allocation2 + $0x218] sm:$0xff]
    %v152 = vld [vmem:[#allocation2 + $0x220] sm:$0xff]
    %v153 = vld [vmem:[#allocation2 + $0x228] sm:$0xff]
    %v154 = vld [vmem:[#allocation2 + $0x230] sm:$0xff]
    %v155 = vld [vmem:[#allocation2 + $0x238] sm:$0xff]
    %v156 = vld [vmem:[#allocation2 + $0x240] sm:$0xff]
    %v157 = vld [vmem:[#allocation2 + $0x248] sm:$0xff]
    %v158 = vld [vmem:[#allocation2 + $0x250] sm:$0xff]
    %v159 = vld [vmem:[#allocation2 + $0x258] sm:$0xff]
    %v160 = vld [vmem:[#allocation2 + $0x260] sm:$0xff]
    %v161 = vld [vmem:[#allocation2 + $0x268] sm:$0xff]
    %v162 = vld [vmem:[#allocation2 + $0x270] sm:$0xff]
    %v163 = vld [vmem:[#allocation2 + $0x278] sm:$0xff]
    %v164 = vld [vmem:[#allocation2 + $0x280] sm:$0xff]
    %v165 = vld [vmem:[#allocation2 + $0x288] sm:$0xff]
    %v166 = vld [vmem:[#allocation2 + $0x290] sm:$0xff]
    %v167 = vld [vmem:[#allocation2 + $0x298] sm:$0xff]
    %v168 = vld [vmem:[#allocation2 + $0x2a0] sm:$0xff]
    %v169 = vld [vmem:[#allocation2 + $0x2a8] sm:$0xff]
    %v170 = vld [vmem:[#allocation2 + $0x2b0] sm:$0xff]
    %v171 = vld [vmem:[#allocation2 + $0x2b8] sm:$0xff]
    %v172 = vld [vmem:[#allocation2 + $0x2c0] sm:$0xff]
    %v173 = vld [vmem:[#allocation2 + $0x2c8] sm:$0xff]
    %v174 = vld [vmem:[#allocation2 + $0x2d0] sm:$0xff]
    %v175 = vld [vmem:[#allocation2 + $0x2d8] sm:$0xff]
    %v176 = vld [vmem:[#allocation2 + $0x2e0] sm:$0xff]
    %v177 = vld [vmem:[#allocation2 + $0x2e8] sm:$0xff]
    %v178 = vld [vmem:[#allocation2 + $0x2f0] sm:$0xff]
    %v179 = vld [vmem:[#allocation2 + $0x2f8] sm:$0xff]
    %v180 = vld [vmem:[#allocation2 + $0x300] sm:$0xff]
    %v181 = vld [vmem:[#allocation2 + $0x308] sm:$0xff]
    %v182 = vld [vmem:[#allocation2 + $0x310] sm:$0xff]
    %v183 = vld [vmem:[#allocation2 + $0x318] sm:$0xff]
    %v184 = vld [vmem:[#allocation2 + $0x320] sm:$0xff]
    %v185 = vld [vmem:[#allocation2 + $0x328] sm:$0xff]
    %v186 = vld [vmem:[#allocation2 + $0x330] sm:$0xff]
    %v187 = vld [vmem:[#allocation2 + $0x338] sm:$0xff]
    %v188 = vld [vmem:[#allocation2 + $0x340] sm:$0xff]
    %v189 = vld [vmem:[#allocation2 + $0x348] sm:$0xff]
    %v190 = vld [vmem:[#allocation2 + $0x350] sm:$0xff]
    %v191 = vld [vmem:[#allocation2 + $0x358] sm:$0xff]
    %v192 = vld [vmem:[#allocation2 + $0x360] sm:$0xff]
    %v193 = vld [vmem:[#allocation2 + $0x368] sm:$0xff]
    %v194 = vld [vmem:[#allocation2 + $0x370] sm:$0xff]
    %v195 = vld [vmem:[#allocation2 + $0x378] sm:$0xff]
    %v196 = vld [vmem:[#allocation2 + $0x380] sm:$0xff]
    %v197 = vld [vmem:[#allocation2 + $0x388] sm:$0xff]
    %v198 = vld [vmem:[#allocation2 + $0x390] sm:$0xff]
    %v199 = vld [vmem:[#allocation2 + $0x398] sm:$0xff]
    %v200 = vld [vmem:[#allocation2 + $0x3a0] sm:$0xff]
    %v201 = vld [vmem:[#allocation2 + $0x3a8] sm:$0xff]
    %v202 = vld [vmem:[#allocation2 + $0x3b0] sm:$0xff]
    %v203 = vld [vmem:[#allocation2 + $0x3b8] sm:$0xff]
    %v204 = vld [vmem:[#allocation2 + $0x3c0] sm:$0xff]
    %v205 = vld [vmem:[#allocation2 + $0x3c8] sm:$0xff]
    %v206 = vld [vmem:[#allocation2 + $0x3d0] sm:$0xff]
    %v207 = vld [vmem:[#allocation2 + $0x3d8] sm:$0xff]
    %v208 = vld [vmem:[#allocation2 + $0x3e0] sm:$0xff]
    %v209 = vld [vmem:[#allocation2 + $0x3e8] sm:$0xff]
    %v210 = vld [vmem:[#allocation2 + $0x3f0] sm:$0xff]
    %v211 = vld [vmem:[#allocation2 + $0x3f8] sm:$0xff]
    %v340 = vunpack.c.l.b16 %v84
    %v341 = vunpack.c.h.b16 %v84
    %v342 = vunpack.c.l.b16 %v85
    %v343 = vunpack.c.h.b16 %v85
    %v344 = vunpack.c.l.b16 %v86
    %v345 = vunpack.c.h.b16 %v86
    %v346 = vunpack.c.l.b16 %v87
    %v347 = vunpack.c.h.b16 %v87
    %v348 = vunpack.c.l.b16 %v88
    %v349 = vunpack.c.h.b16 %v88
    %v350 = vunpack.c.l.b16 %v89
    %v351 = vunpack.c.h.b16 %v89
    %v352 = vunpack.c.l.b16 %v90
    %v353 = vunpack.c.h.b16 %v90
    %v354 = vunpack.c.l.b16 %v91
    %v355 = vunpack.c.h.b16 %v91
    %v356 = vunpack.c.l.b16 %v92
    %v357 = vunpack.c.h.b16 %v92
    %v358 = vunpack.c.l.b16 %v93
    %v359 = vunpack.c.h.b16 %v93
    %v360 = vunpack.c.l.b16 %v94
    %v361 = vunpack.c.h.b16 %v94
    %v362 = vunpack.c.l.b16 %v95
    %v363 = vunpack.c.h.b16 %v95
    %v364 = vunpack.c.l.b16 %v96
    %v365 = vunpack.c.h.b16 %v96
    %v366 = vunpack.c.l.b16 %v97
    %v367 = vunpack.c.h.b16 %v97
    %v368 = vunpack.c.l.b16 %v98
    %v369 = vunpack.c.h.b16 %v98
    %v370 = vunpack.c.l.b16 %v99
    %v371 = vunpack.c.h.b16 %v99
    %v372 = vunpack.c.l.b16 %v100
    %v373 = vunpack.c.h.b16 %v100
    %v374 = vunpack.c.l.b16 %v101
    %v375 = vunpack.c.h.b16 %v101
    %v376 = vunpack.c.l.b16 %v102
    %v377 = vunpack.c.h.b16 %v102
    %v378 = vunpack.c.l.b16 %v103
    %v379 = vunpack.c.h.b16 %v103
    %v380 = vunpack.c.l.b16 %v104
    %v381 = vunpack.c.h.b16 %v104
    %v382 = vunpack.c.l.b16 %v105
    %v383 = vunpack.c.h.b16 %v105
    %v384 = vunpack.c.l.b16 %v106
    %v385 = vunpack.c.h.b16 %v106
    %v386 = vunpack.c.l.b16 %v107
    %v387 = vunpack.c.h.b16 %v107
    %v388 = vunpack.c.l.b16 %v108
    %v389 = vunpack.c.h.b16 %v108
    %v390 = vunpack.c.l.b16 %v109
    %v391 = vunpack.c.h.b16 %v109
    %v392 = vunpack.c.l.b16 %v110
    %v393 = vunpack.c.h.b16 %v110
    %v394 = vunpack.c.l.b16 %v111
    %v395 = vunpack.c.h.b16 %v111
    %v396 = vunpack.c.l.b16 %v112
    %v397 = vunpack.c.h.b16 %v112
    %v398 = vunpack.c.l.b16 %v113
    %v399 = vunpack.c.h.b16 %v113
    %v400 = vunpack.c.l.b16 %v114
    %v401 = vunpack.c.h.b16 %v114
    %v402 = vunpack.c.l.b16 %v115
    %v403 = vunpack.c.h.b16 %v115
    %v404 = vunpack.c.l.b16 %v116
    %v405 = vunpack.c.h.b16 %v116
    %v406 = vunpack.c.l.b16 %v117
    %v407 = vunpack.c.h.b16 %v117
    %v408 = vunpack.c.l.b16 %v118
    %v409 = vunpack.c.h.b16 %v118
    %v410 = vunpack.c.l.b16 %v119
    %v411 = vunpack.c.h.b16 %v119
    %v412 = vunpack.c.l.b16 %v120
    %v413 = vunpack.c.h.b16 %v120
    %v414 = vunpack.c.l.b16 %v121
    %v415 = vunpack.c.h.b16 %v121
    %v416 = vunpack.c.l.b16 %v122
    %v417 = vunpack.c.h.b16 %v122
    %v418 = vunpack.c.l.b16 %v123
    %v419 = vunpack.c.h.b16 %v123
    %v420 = vunpack.c.l.b16 %v124
    %v421 = vunpack.c.h.b16 %v124
    %v422 = vunpack.c.l.b16 %v125
    %v423 = vunpack.c.h.b16 %v125
    %v424 = vunpack.c.l.b16 %v126
    %v425 = vunpack.c.h.b16 %v126
    %v426 = vunpack.c.l.b16 %v127
    %v427 = vunpack.c.h.b16 %v127
    %v428 = vunpack.c.l.b16 %v128
    %v429 = vunpack.c.h.b16 %v128
    %v430 = vunpack.c.l.b16 %v129
    %v431 = vunpack.c.h.b16 %v129
    %v432 = vunpack.c.l.b16 %v130
    %v433 = vunpack.c.h.b16 %v130
    %v434 = vunpack.c.l.b16 %v131
    %v435 = vunpack.c.h.b16 %v131
    %v436 = vunpack.c.l.b16 %v132
    %v437 = vunpack.c.h.b16 %v132
    %v438 = vunpack.c.l.b16 %v133
    %v439 = vunpack.c.h.b16 %v133
    %v440 = vunpack.c.l.b16 %v134
    %v441 = vunpack.c.h.b16 %v134
    %v442 = vunpack.c.l.b16 %v135
    %v443 = vunpack.c.h.b16 %v135
    %v444 = vunpack.c.l.b16 %v136
    %v445 = vunpack.c.h.b16 %v136
    %v446 = vunpack.c.l.b16 %v137
    %v447 = vunpack.c.h.b16 %v137
    %v448 = vunpack.c.l.b16 %v138
    %v449 = vunpack.c.h.b16 %v138
    %v450 = vunpack.c.l.b16 %v139
    %v451 = vunpack.c.h.b16 %v139
    %v452 = vunpack.c.l.b16 %v140
    %v453 = vunpack.c.h.b16 %v140
    %v454 = vunpack.c.l.b16 %v141
    %v455 = vunpack.c.h.b16 %v141
    %v456 = vunpack.c.l.b16 %v142
    %v457 = vunpack.c.h.b16 %v142
    %v458 = vunpack.c.l.b16 %v143
    %v459 = vunpack.c.h.b16 %v143
    %v460 = vunpack.c.l.b16 %v144
    %v461 = vunpack.c.h.b16 %v144
    %v462 = vunpack.c.l.b16 %v145
    %v463 = vunpack.c.h.b16 %v145
    %v464 = vunpack.c.l.b16 %v146
    %v465 = vunpack.c.h.b16 %v146
    %v466 = vunpack.c.l.b16 %v147
    %v467 = vunpack.c.h.b16 %v147
    %v468 = vunpack.c.l.b16 %v148
    %v469 = vunpack.c.h.b16 %v148
    %v470 = vunpack.c.l.b16 %v149
    %v471 = vunpack.c.h.b16 %v149
    %v472 = vunpack.c.l.b16 %v150
    %v473 = vunpack.c.h.b16 %v150
    %v474 = vunpack.c.l.b16 %v151
    %v475 = vunpack.c.h.b16 %v151
    %v476 = vunpack.c.l.b16 %v152
    %v477 = vunpack.c.h.b16 %v152
    %v478 = vunpack.c.l.b16 %v153
    %v479 = vunpack.c.h.b16 %v153
    %v480 = vunpack.c.l.b16 %v154
    %v481 = vunpack.c.h.b16 %v154
    %v482 = vunpack.c.l.b16 %v155
    %v483 = vunpack.c.h.b16 %v155
    %v484 = vunpack.c.l.b16 %v156
    %v485 = vunpack.c.h.b16 %v156
    %v486 = vunpack.c.l.b16 %v157
    %v487 = vunpack.c.h.b16 %v157
    %v488 = vunpack.c.l.b16 %v158
    %v489 = vunpack.c.h.b16 %v158
    %v490 = vunpack.c.l.b16 %v159
    %v491 = vunpack.c.h.b16 %v159
    %v492 = vunpack.c.l.b16 %v160
    %v493 = vunpack.c.h.b16 %v160
    %v494 = vunpack.c.l.b16 %v161
    %v495 = vunpack.c.h.b16 %v161
    %v496 = vunpack.c.l.b16 %v162
    %v497 = vunpack.c.h.b16 %v162
    %v498 = vunpack.c.l.b16 %v163
    %v499 = vunpack.c.h.b16 %v163
    %v500 = vunpack.c.l.b16 %v164
    %v501 = vunpack.c.h.b16 %v164
    %v502 = vunpack.c.l.b16 %v165
    %v503 = vunpack.c.h.b16 %v165
    %v504 = vunpack.c.l.b16 %v166
    %v505 = vunpack.c.h.b16 %v166
    %v506 = vunpack.c.l.b16 %v167
    %v507 = vunpack.c.h.b16 %v167
    %v508 = vunpack.c.l.b16 %v168
    %v509 = vunpack.c.h.b16 %v168
    %v510 = vunpack.c.l.b16 %v169
    %v511 = vunpack.c.h.b16 %v169
    %v512 = vunpack.c.l.b16 %v170
    %v513 = vunpack.c.h.b16 %v170
    %v514 = vunpack.c.l.b16 %v171
    %v515 = vunpack.c.h.b16 %v171
    %v516 = vunpack.c.l.b16 %v172
    %v517 = vunpack.c.h.b16 %v172
    %v518 = vunpack.c.l.b16 %v173
    %v519 = vunpack.c.h.b16 %v173
    %v520 = vunpack.c.l.b16 %v174
    %v521 = vunpack.c.h.b16 %v174
    %v522 = vunpack.c.l.b16 %v175
    %v523 = vunpack.c.h.b16 %v175
    %v524 = vunpack.c.l.b16 %v176
    %v525 = vunpack.c.h.b16 %v176
    %v526 = vunpack.c.l.b16 %v177
    %v527 = vunpack.c.h.b16 %v177
    %v528 = vunpack.c.l.b16 %v178
    %v529 = vunpack.c.h.b16 %v178
    %v530 = vunpack.c.l.b16 %v179
    %v531 = vunpack.c.h.b16 %v179
    %v532 = vunpack.c.l.b16 %v180
    %v533 = vunpack.c.h.b16 %v180
    %v534 = vunpack.c.l.b16 %v181
    %v535 = vunpack.c.h.b16 %v181
    %v536 = vunpack.c.l.b16 %v182
    %v537 = vunpack.c.h.b16 %v182
    %v538 = vunpack.c.l.b16 %v183
    %v539 = vunpack.c.h.b16 %v183
    %v540 = vunpack.c.l.b16 %v184
    %v541 = vunpack.c.h.b16 %v184
    %v542 = vunpack.c.l.b16 %v185
    %v543 = vunpack.c.h.b16 %v185
    %v544 = vunpack.c.l.b16 %v186
    %v545 = vunpack.c.h.b16 %v186
    %v546 = vunpack.c.l.b16 %v187
    %v547 = vunpack.c.h.b16 %v187
    %v548 = vunpack.c.l.b16 %v188
    %v549 = vunpack.c.h.b16 %v188
    %v550 = vunpack.c.l.b16 %v189
    %v551 = vunpack.c.h.b16 %v189
    %v552 = vunpack.c.l.b16 %v190
    %v553 = vunpack.c.h.b16 %v190
    %v554 = vunpack.c.l.b16 %v191
    %v555 = vunpack.c.h.b16 %v191
    %v556 = vunpack.c.l.b16 %v192
    %v557 = vunpack.c.h.b16 %v192
    %v558 = vunpack.c.l.b16 %v193
    %v559 = vunpack.c.h.b16 %v193
    %v560 = vunpack.c.l.b16 %v194
    %v561 = vunpack.c.h.b16 %v194
    %v562 = vunpack.c.l.b16 %v195
    %v563 = vunpack.c.h.b16 %v195
    %v564 = vunpack.c.l.b16 %v196
    %v565 = vunpack.c.h.b16 %v196
    %v566 = vunpack.c.l.b16 %v197
    %v567 = vunpack.c.h.b16 %v197
    %v568 = vunpack.c.l.b16 %v198
    %v569 = vunpack.c.h.b16 %v198
    %v570 = vunpack.c.l.b16 %v199
    %v571 = vunpack.c.h.b16 %v199
    %v572 = vunpack.c.l.b16 %v200
    %v573 = vunpack.c.h.b16 %v200
    %v574 = vunpack.c.l.b16 %v201
    %v575 = vunpack.c.h.b16 %v201
    %v576 = vunpack.c.l.b16 %v202
    %v577 = vunpack.c.h.b16 %v202
    %v578 = vunpack.c.l.b16 %v203
    %v579 = vunpack.c.h.b16 %v203
    %v580 = vunpack.c.l.b16 %v204
    %v581 = vunpack.c.h.b16 %v204
    %v582 = vunpack.c.l.b16 %v205
    %v583 = vunpack.c.h.b16 %v205
    %v584 = vunpack.c.l.b16 %v206
    %v585 = vunpack.c.h.b16 %v206
    %v586 = vunpack.c.l.b16 %v207
    %v587 = vunpack.c.h.b16 %v207
    %v588 = vunpack.c.l.b16 %v208
    %v589 = vunpack.c.h.b16 %v208
    %v590 = vunpack.c.l.b16 %v209
    %v591 = vunpack.c.h.b16 %v209
    %v592 = vunpack.c.l.b16 %v210
    %v593 = vunpack.c.h.b16 %v210
    %v594 = vunpack.c.l.b16 %v211
    %v595 = vunpack.c.h.b16 %v211
    %v596 = vpack.c.b16 %v342, %v340
    %v597 = vpack.c.b16 %v343, %v341
    %v598 = vpack.c.b16 %v346, %v344
    %v599 = vpack.c.b16 %v347, %v345
    %v600 = vpack.c.b16 %v350, %v348
    %v601 = vpack.c.b16 %v351, %v349
    %v602 = vpack.c.b16 %v354, %v352
    %v603 = vpack.c.b16 %v355, %v353
    %v604 = vpack.c.b16 %v358, %v356
    %v605 = vpack.c.b16 %v359, %v357
    %v606 = vpack.c.b16 %v362, %v360
    %v607 = vpack.c.b16 %v363, %v361
    %v608 = vpack.c.b16 %v366, %v364
    %v609 = vpack.c.b16 %v367, %v365
    %v610 = vpack.c.b16 %v370, %v368
    %v611 = vpack.c.b16 %v371, %v369
    %v612 = vpack.c.b16 %v374, %v372
    %v613 = vpack.c.b16 %v375, %v373
    %v614 = vpack.c.b16 %v378, %v376
    %v615 = vpack.c.b16 %v379, %v377
    %v616 = vpack.c.b16 %v382, %v380
    %v617 = vpack.c.b16 %v383, %v381
    %v618 = vpack.c.b16 %v386, %v384
    %v619 = vpack.c.b16 %v387, %v385
    %v620 = vpack.c.b16 %v390, %v388
    %v621 = vpack.c.b16 %v391, %v389
    %v622 = vpack.c.b16 %v394, %v392
    %v623 = vpack.c.b16 %v395, %v393
    %v624 = vpack.c.b16 %v398, %v396
    %v625 = vpack.c.b16 %v399, %v397
    %v626 = vpack.c.b16 %v402, %v400
    %v627 = vpack.c.b16 %v403, %v401
    %v628 = vpack.c.b16 %v406, %v404
    %v629 = vpack.c.b16 %v407, %v405
    %v630 = vpack.c.b16 %v410, %v408
    %v631 = vpack.c.b16 %v411, %v409
    %v632 = vpack.c.b16 %v414, %v412
    %v633 = vpack.c.b16 %v415, %v413
    %v634 = vpack.c.b16 %v418, %v416
    %v635 = vpack.c.b16 %v419, %v417
    %v636 = vpack.c.b16 %v422, %v420
    %v637 = vpack.c.b16 %v423, %v421
    %v638 = vpack.c.b16 %v426, %v424
    %v639 = vpack.c.b16 %v427, %v425
    %v640 = vpack.c.b16 %v430, %v428
    %v641 = vpack.c.b16 %v431, %v429
    %v642 = vpack.c.b16 %v434, %v432
    %v643 = vpack.c.b16 %v435, %v433
    %v644 = vpack.c.b16 %v438, %v436
    %v645 = vpack.c.b16 %v439, %v437
    %v646 = vpack.c.b16 %v442, %v440
    %v647 = vpack.c.b16 %v443, %v441
    %v648 = vpack.c.b16 %v446, %v444
    %v649 = vpack.c.b16 %v447, %v445
    %v650 = vpack.c.b16 %v450, %v448
    %v651 = vpack.c.b16 %v451, %v449
    %v652 = vpack.c.b16 %v454, %v452
    %v653 = vpack.c.b16 %v455, %v453
    %v654 = vpack.c.b16 %v458, %v456
    %v655 = vpack.c.b16 %v459, %v457
    %v656 = vpack.c.b16 %v462, %v460
    %v657 = vpack.c.b16 %v463, %v461
    %v658 = vpack.c.b16 %v466, %v464
    %v659 = vpack.c.b16 %v467, %v465
    %v660 = vpack.c.b16 %v470, %v468
    %v661 = vpack.c.b16 %v471, %v469
    %v662 = vpack.c.b16 %v474, %v472
    %v663 = vpack.c.b16 %v475, %v473
    %v664 = vpack.c.b16 %v478, %v476
    %v665 = vpack.c.b16 %v479, %v477
    %v666 = vpack.c.b16 %v482, %v480
    %v667 = vpack.c.b16 %v483, %v481
    %v668 = vpack.c.b16 %v486, %v484
    %v669 = vpack.c.b16 %v487, %v485
    %v670 = vpack.c.b16 %v490, %v488
    %v671 = vpack.c.b16 %v491, %v489
    %v672 = vpack.c.b16 %v494, %v492
    %v673 = vpack.c.b16 %v495, %v493
    %v674 = vpack.c.b16 %v498, %v496
    %v675 = vpack.c.b16 %v499, %v497
    %v676 = vpack.c.b16 %v502, %v500
    %v677 = vpack.c.b16 %v503, %v501
    %v678 = vpack.c.b16 %v506, %v504
    %v679 = vpack.c.b16 %v507, %v505
    %v680 = vpack.c.b16 %v510, %v508
    %v681 = vpack.c.b16 %v511, %v509
    %v682 = vpack.c.b16 %v514, %v512
    %v683 = vpack.c.b16 %v515, %v513
    %v684 = vpack.c.b16 %v518, %v516
    %v685 = vpack.c.b16 %v519, %v517
    %v686 = vpack.c.b16 %v522, %v520
    %v687 = vpack.c.b16 %v523, %v521
    %v688 = vpack.c.b16 %v526, %v524
    %v689 = vpack.c.b16 %v527, %v525
    %v690 = vpack.c.b16 %v530, %v528
    %v691 = vpack.c.b16 %v531, %v529
    %v692 = vpack.c.b16 %v534, %v532
    %v693 = vpack.c.b16 %v535, %v533
    %v694 = vpack.c.b16 %v538, %v536
    %v695 = vpack.c.b16 %v539, %v537
    %v696 = vpack.c.b16 %v542, %v540
    %v697 = vpack.c.b16 %v543, %v541
    %v698 = vpack.c.b16 %v546, %v544
    %v699 = vpack.c.b16 %v547, %v545
    %v700 = vpack.c.b16 %v550, %v548
    %v701 = vpack.c.b16 %v551, %v549
    %v702 = vpack.c.b16 %v554, %v552
    %v703 = vpack.c.b16 %v555, %v553
    %v704 = vpack.c.b16 %v558, %v556
    %v705 = vpack.c.b16 %v559, %v557
    %v706 = vpack.c.b16 %v562, %v560
    %v707 = vpack.c.b16 %v563, %v561
    %v708 = vpack.c.b16 %v566, %v564
    %v709 = vpack.c.b16 %v567, %v565
    %v710 = vpack.c.b16 %v570, %v568
    %v711 = vpack.c.b16 %v571, %v569
    %v712 = vpack.c.b16 %v574, %v572
    %v713 = vpack.c.b16 %v575, %v573
    %v714 = vpack.c.b16 %v578, %v576
    %v715 = vpack.c.b16 %v579, %v577
    %v716 = vpack.c.b16 %v582, %v580
    %v717 = vpack.c.b16 %v583, %v581
    %v718 = vpack.c.b16 %v586, %v584
    %v719 = vpack.c.b16 %v587, %v585
    %v720 = vpack.c.b16 %v590, %v588
    %v721 = vpack.c.b16 %v591, %v589
    %v722 = vpack.c.b16 %v594, %v592
    %v723 = vpack.c.b16 %v595, %v593
    %852 = vmatprep.subr.bf16.mxu0 %v597
    %853 = vmatpush1.bf16.msra.mxu0 %v596
    %854 = vmatprep.subr.bf16.mxu0 %v599
    %855 = vmatpush1.bf16.msra.mxu0 %v598
    %856 = vmatprep.subr.bf16.mxu0 %v601
    %857 = vmatpush1.bf16.msra.mxu0 %v600
    %858 = vmatprep.subr.bf16.mxu0 %v603
    %859 = vmatpush1.bf16.msra.mxu0 %v602
    %860 = vmatprep.subr.bf16.mxu0 %v605
    %861 = vmatpush1.bf16.msra.mxu0 %v604
    %862 = vmatprep.subr.bf16.mxu0 %v607
    %863 = vmatpush1.bf16.msra.mxu0 %v606
    %864 = vmatprep.subr.bf16.mxu0 %v609
    %865 = vmatpush1.bf16.msra.mxu0 %v608
    %866 = vmatprep.subr.bf16.mxu0 %v611
    %867 = vmatpush1.bf16.msra.mxu0 %v610
    %868 = vmatprep.subr.bf16.mxu0 %v613
    %869 = vmatpush1.bf16.msra.mxu0 %v612
    %870 = vmatprep.subr.bf16.mxu0 %v615
    %871 = vmatpush1.bf16.msra.mxu0 %v614
    %872 = vmatprep.subr.bf16.mxu0 %v617
    %873 = vmatpush1.bf16.msra.mxu0 %v616
    %874 = vmatprep.subr.bf16.mxu0 %v619
    %875 = vmatpush1.bf16.msra.mxu0 %v618
    %876 = vmatprep.subr.bf16.mxu0 %v621
    %877 = vmatpush1.bf16.msra.mxu0 %v620
    %878 = vmatprep.subr.bf16.mxu0 %v623
    %879 = vmatpush1.bf16.msra.mxu0 %v622
    %880 = vmatprep.subr.bf16.mxu0 %v625
    %881 = vmatpush1.bf16.msra.mxu0 %v624
    %882 = vmatprep.subr.bf16.mxu0 %v627
    %883 = vmatpush1.bf16.msra.mxu0 %v626
    %884 = vmatprep.mubr.bf16.mxu0 %v77
    %885 = vmatmul.mubr.bf16.gmra.mrb[0].mxu0 %v76
    %v886 = vpop.f32.mrb[0].mxu0
    %v887 = vadd.f32 0.0, %v886
    %v888 = vpop.f32.mrb[0].mxu0
    %v889 = vadd.f32 0.0, %v888
    %v890 = vpop.f32.mrb[0].mxu0
    %v891 = vpop.f32.mrb[0].mxu0
    %892 = vdwg.mxu0
    %893 = vmatprep.subr.bf16.mxu0 %v629
    %894 = vmatpush1.bf16.msra.mxu0 %v628
    %895 = vmatprep.subr.bf16.mxu0 %v631
    %896 = vmatpush1.bf16.msra.mxu0 %v630
    %897 = vmatprep.subr.bf16.mxu0 %v633
    %898 = vmatpush1.bf16.msra.mxu0 %v632
    %899 = vmatprep.subr.bf16.mxu0 %v635
    %900 = vmatpush1.bf16.msra.mxu0 %v634
    %901 = vmatprep.subr.bf16.mxu0 %v637
    %902 = vmatpush1.bf16.msra.mxu0 %v636
    %903 = vmatprep.subr.bf16.mxu0 %v639
    %904 = vmatpush1.bf16.msra.mxu0 %v638
    %905 = vmatprep.subr.bf16.mxu0 %v641
    %906 = vmatpush1.bf16.msra.mxu0 %v640
    %907 = vmatprep.subr.bf16.mxu0 %v643
    %908 = vmatpush1.bf16.msra.mxu0 %v642
    %909 = vmatprep.subr.bf16.mxu0 %v645
    %910 = vmatpush1.bf16.msra.mxu0 %v644
    %911 = vmatprep.subr.bf16.mxu0 %v647
    %912 = vmatpush1.bf16.msra.mxu0 %v646
    %913 = vmatprep.subr.bf16.mxu0 %v649
    %914 = vmatpush1.bf16.msra.mxu0 %v648
    %915 = vmatprep.subr.bf16.mxu0 %v651
    %916 = vmatpush1.bf16.msra.mxu0 %v650
    %917 = vmatprep.subr.bf16.mxu0 %v653
    %918 = vmatpush1.bf16.msra.mxu0 %v652
    %919 = vmatprep.subr.bf16.mxu0 %v655
    %920 = vmatpush1.bf16.msra.mxu0 %v654
    %921 = vmatprep.subr.bf16.mxu0 %v657
    %922 = vmatpush1.bf16.msra.mxu0 %v656
    %923 = vmatprep.subr.bf16.mxu0 %v659
    %924 = vmatpush1.bf16.msra.mxu0 %v658
    %925 = vmatprep.mubr.bf16.mxu0 %v79
    %926 = vmatmul.mubr.bf16.gmra.mrb[0].mxu0 %v78
    %v927 = vpop.f32.mrb[0].mxu0
    %v928 = vadd.f32 %v887, %v927
    %v929 = vpop.f32.mrb[0].mxu0
    %v930 = vadd.f32 %v889, %v929
    %v931 = vpop.f32.mrb[0].mxu0
    %v932 = vpop.f32.mrb[0].mxu0
    %933 = vdwg.mxu0
    %934 = vmatprep.subr.bf16.mxu0 %v661
    %935 = vmatpush1.bf16.msra.mxu0 %v660
    %936 = vmatprep.subr.bf16.mxu0 %v663
    %937 = vmatpush1.bf16.msra.mxu0 %v662
    %938 = vmatprep.subr.bf16.mxu0 %v665
    %939 = vmatpush1.bf16.msra.mxu0 %v664
    %940 = vmatprep.subr.bf16.mxu0 %v667
    %941 = vmatpush1.bf16.msra.mxu0 %v666
    %942 = vmatprep.subr.bf16.mxu0 %v669
    %943 = vmatpush1.bf16.msra.mxu0 %v668
    %944 = vmatprep.subr.bf16.mxu0 %v671
    %945 = vmatpush1.bf16.msra.mxu0 %v670
    %946 = vmatprep.subr.bf16.mxu0 %v673
    %947 = vmatpush1.bf16.msra.mxu0 %v672
    %948 = vmatprep.subr.bf16.mxu0 %v675
    %949 = vmatpush1.bf16.msra.mxu0 %v674
    %950 = vmatprep.subr.bf16.mxu0 %v677
    %951 = vmatpush1.bf16.msra.mxu0 %v676
    %952 = vmatprep.subr.bf16.mxu0 %v679
    %953 = vmatpush1.bf16.msra.mxu0 %v678
    %954 = vmatprep.subr.bf16.mxu0 %v681
    %955 = vmatpush1.bf16.msra.mxu0 %v680
    %956 = vmatprep.subr.bf16.mxu0 %v683
    %957 = vmatpush1.bf16.msra.mxu0 %v682
    %958 = vmatprep.subr.bf16.mxu0 %v685
    %959 = vmatpush1.bf16.msra.mxu0 %v684
    %960 = vmatprep.subr.bf16.mxu0 %v687
    %961 = vmatpush1.bf16.msra.mxu0 %v686
    %962 = vmatprep.subr.bf16.mxu0 %v689
    %963 = vmatpush1.bf16.msra.mxu0 %v688
    %964 = vmatprep.subr.bf16.mxu0 %v691
    %965 = vmatpush1.bf16.msra.mxu0 %v690
    %966 = vmatprep.mubr.bf16.mxu0 %v81
    %967 = vmatmul.mubr.bf16.gmra.mrb[0].mxu0 %v80
    %v968 = vpop.f32.mrb[0].mxu0
    %v969 = vadd.f32 %v928, %v968
    %v970 = vpop.f32.mrb[0].mxu0
    %v971 = vadd.f32 %v930, %v970
    %v972 = vpop.f32.mrb[0].mxu0
    %v973 = vpop.f32.mrb[0].mxu0
    %974 = vdwg.mxu0
    %975 = vmatprep.subr.bf16.mxu0 %v693
    %976 = vmatpush1.bf16.msra.mxu0 %v692
    %977 = vmatprep.subr.bf16.mxu0 %v695
    %978 = vmatpush1.bf16.msra.mxu0 %v694
    %979 = vmatprep.subr.bf16.mxu0 %v697
    %980 = vmatpush1.bf16.msra.mxu0 %v696
    %981 = vmatprep.subr.bf16.mxu0 %v699
    %982 = vmatpush1.bf16.msra.mxu0 %v698
    %983 = vmatprep.subr.bf16.mxu0 %v701
    %984 = vmatpush1.bf16.msra.mxu0 %v700
    %985 = vmatprep.subr.bf16.mxu0 %v703
    %986 = vmatpush1.bf16.msra.mxu0 %v702
    %987 = vmatprep.subr.bf16.mxu0 %v705
    %988 = vmatpush1.bf16.msra.mxu0 %v704
    %989 = vmatprep.subr.bf16.mxu0 %v707
    %990 = vmatpush1.bf16.msra.mxu0 %v706
    %991 = vmatprep.subr.bf16.mxu0 %v709
    %992 = vmatpush1.bf16.msra.mxu0 %v708
    %993 = vmatprep.subr.bf16.mxu0 %v711
    %994 = vmatpush1.bf16.msra.mxu0 %v710
    %995 = vmatprep.subr.bf16.mxu0 %v713
    %996 = vmatpush1.bf16.msra.mxu0 %v712
    %997 = vmatprep.subr.bf16.mxu0 %v715
    %998 = vmatpush1.bf16.msra.mxu0 %v714
    %999 = vmatprep.subr.bf16.mxu0 %v717
    %1000 = vmatpush1.bf16.msra.mxu0 %v716
    %1001 = vmatprep.subr.bf16.mxu0 %v719
    %1002 = vmatpush1.bf16.msra.mxu0 %v718
    %1003 = vmatprep.subr.bf16.mxu0 %v721
    %1004 = vmatpush1.bf16.msra.mxu0 %v720
    %1005 = vmatprep.subr.bf16.mxu0 %v723
    %1006 = vmatpush1.bf16.msra.mxu0 %v722
    %1007 = vmatprep.mubr.bf16.mxu0 %v83
    %1008 = vmatmul.mubr.bf16.gmra.mrb[0].mxu0 %v82
    %v1009 = vpop.f32.mrb[0].mxu0
    %v1010 = vadd.f32 %v969, %v1009
    %v1011 = vpop.f32.mrb[0].mxu0
    %v1012 = vadd.f32 %v971, %v1011
    %v1013 = vpop.f32.mrb[0].mxu0
    %v1014 = vpop.f32.mrb[0].mxu0
    %1015 = vdwg.mxu0
    %v1016 = vmax.f32 %v1010, 0.0
    %v1017 = vmax.f32 %v1012, 0.0
    %v1018 = vpack.c.bf16 %v1016, %v1016
    %v1019 = vpack.c.bf16 %v1017, %v1017
    %v1020 = vld [vmem:[%s2] sm:$0xf]
    %v1021 = vld [vmem:[%s2 + $0x4] sm:$0xf]
    %v1022 = vld [vmem:[%s2 + $0x8] sm:$0xf]
    %v1023 = vld [vmem:[%s2 + $0xc] sm:$0xf]
    %v1024 = vld [vmem:[%s2 + $0x10] sm:$0xf]
    %v1025 = vld [vmem:[%s2 + $0x14] sm:$0xf]
    %v1026 = vld [vmem:[%s2 + $0x18] sm:$0xf]
    %v1027 = vld [vmem:[%s2 + $0x1c] sm:$0xf]
    %v1028 = vld [vmem:[%s2 + $0x20] sm:$0xf]
    %v1029 = vld [vmem:[%s2 + $0x24] sm:$0xf]
    %v1030 = vld [vmem:[%s2 + $0x28] sm:$0xf]
    %v1031 = vld [vmem:[%s2 + $0x2c] sm:$0xf]
    %v1032 = vld [vmem:[%s2 + $0x30] sm:$0xf]
    %v1033 = vld [vmem:[%s2 + $0x34] sm:$0xf]
    %v1034 = vld [vmem:[%s2 + $0x38] sm:$0xf]
    %v1035 = vld [vmem:[%s2 + $0x3c] sm:$0xf]
    %v1036 = vld [vmem:[%s2 + $0x40] sm:$0xf]
    %v1037 = vld [vmem:[%s2 + $0x44] sm:$0xf]
    %v1038 = vld [vmem:[%s2 + $0x48] sm:$0xf]
    %v1039 = vld [vmem:[%s2 + $0x4c] sm:$0xf]
    %v1040 = vld [vmem:[%s2 + $0x50] sm:$0xf]
    %v1041 = vld [vmem:[%s2 + $0x54] sm:$0xf]
    %v1042 = vld [vmem:[%s2 + $0x58] sm:$0xf]
    %v1043 = vld [vmem:[%s2 + $0x5c] sm:$0xf]
    %v1044 = vld [vmem:[%s2 + $0x60] sm:$0xf]
    %v1045 = vld [vmem:[%s2 + $0x64] sm:$0xf]
    %v1046 = vld [vmem:[%s2 + $0x68] sm:$0xf]
    %v1047 = vld [vmem:[%s2 + $0x6c] sm:$0xf]
    %v1048 = vld [vmem:[%s2 + $0x70] sm:$0xf]
    %v1049 = vld [vmem:[%s2 + $0x74] sm:$0xf]
    %v1050 = vld [vmem:[%s2 + $0x78] sm:$0xf]
    %v1051 = vld [vmem:[%s2 + $0x7c] sm:$0xf]
    %v1084 = vunpack.c.l.b16 %v1020
    %v1085 = vunpack.c.l.b16 %v1021
    %v1086 = vunpack.c.l.b16 %v1022
    %v1087 = vunpack.c.l.b16 %v1023
    %v1088 = vunpack.c.l.b16 %v1024
    %v1089 = vunpack.c.l.b16 %v1025
    %v1090 = vunpack.c.l.b16 %v1026
    %v1091 = vunpack.c.l.b16 %v1027
    %v1092 = vunpack.c.l.b16 %v1028
    %v1093 = vunpack.c.l.b16 %v1029
    %v1094 = vunpack.c.l.b16 %v1030
    %v1095 = vunpack.c.l.b16 %v1031
    %v1096 = vunpack.c.l.b16 %v1032
    %v1097 = vunpack.c.l.b16 %v1033
    %v1098 = vunpack.c.l.b16 %v1034
    %v1099 = vunpack.c.l.b16 %v1035
    %v1100 = vunpack.c.l.b16 %v1036
    %v1101 = vunpack.c.l.b16 %v1037
    %v1102 = vunpack.c.l.b16 %v1038
    %v1103 = vunpack.c.l.b16 %v1039
    %v1104 = vunpack.c.l.b16 %v1040
    %v1105 = vunpack.c.l.b16 %v1041
    %v1106 = vunpack.c.l.b16 %v1042
    %v1107 = vunpack.c.l.b16 %v1043
    %v1108 = vunpack.c.l.b16 %v1044
    %v1109 = vunpack.c.l.b16 %v1045
    %v1110 = vunpack.c.l.b16 %v1046
    %v1111 = vunpack.c.l.b16 %v1047
    %v1112 = vunpack.c.l.b16 %v1048
    %v1113 = vunpack.c.l.b16 %v1049
    %v1114 = vunpack.c.l.b16 %v1050
    %v1115 = vunpack.c.l.b16 %v1051
    %v1116 = vpack.c.b16 %v1085, %v1084
    %v1117 = vpack.c.b16 %v1087, %v1086
    %v1118 = vpack.c.b16 %v1089, %v1088
    %v1119 = vpack.c.b16 %v1091, %v1090
    %v1120 = vpack.c.b16 %v1093, %v1092
    %v1121 = vpack.c.b16 %v1095, %v1094
    %v1122 = vpack.c.b16 %v1097, %v1096
    %v1123 = vpack.c.b16 %v1099, %v1098
    %v1124 = vpack.c.b16 %v1101, %v1100
    %v1125 = vpack.c.b16 %v1103, %v1102
    %v1126 = vpack.c.b16 %v1105, %v1104
    %v1127 = vpack.c.b16 %v1107, %v1106
    %v1128 = vpack.c.b16 %v1109, %v1108
    %v1129 = vpack.c.b16 %v1111, %v1110
    %v1130 = vpack.c.b16 %v1113, %v1112
    %v1131 = vpack.c.b16 %v1115, %v1114
    %1148 = vmatprep.subr.bf16.mxu0 0
    %1149 = vmatpush1.bf16.msra.mxu0 %v1116
    %1150 = vmatprep.subr.bf16.mxu0 0
    %1151 = vmatpush1.bf16.msra.mxu0 %v1117
    %1152 = vmatprep.subr.bf16.mxu0 0
    %1153 = vmatpush1.bf16.msra.mxu0 %v1118
    %1154 = vmatprep.subr.bf16.mxu0 0
    %1155 = vmatpush1.bf16.msra.mxu0 %v1119
    %1156 = vmatprep.subr.bf16.mxu0 0
    %1157 = vmatpush1.bf16.msra.mxu0 %v1120
    %1158 = vmatprep.subr.bf16.mxu0 0
    %1159 = vmatpush1.bf16.msra.mxu0 %v1121
    %1160 = vmatprep.subr.bf16.mxu0 0
    %1161 = vmatpush1.bf16.msra.mxu0 %v1122
    %1162 = vmatprep.subr.bf16.mxu0 0
    %1163 = vmatpush1.bf16.msra.mxu0 %v1123
    %1164 = vmatprep.subr.bf16.mxu0 0
    %1165 = vmatpush1.bf16.msra.mxu0 %v1124
    %1166 = vmatprep.subr.bf16.mxu0 0
    %1167 = vmatpush1.bf16.msra.mxu0 %v1125
    %1168 = vmatprep.subr.bf16.mxu0 0
    %1169 = vmatpush1.bf16.msra.mxu0 %v1126
    %1170 = vmatprep.subr.bf16.mxu0 0
    %1171 = vmatpush1.bf16.msra.mxu0 %v1127
    %1172 = vmatprep.subr.bf16.mxu0 0
    %1173 = vmatpush1.bf16.msra.mxu0 %v1128
    %1174 = vmatprep.subr.bf16.mxu0 0
    %1175 = vmatpush1.bf16.msra.mxu0 %v1129
    %1176 = vmatprep.subr.bf16.mxu0 0
    %1177 = vmatpush1.bf16.msra.mxu0 %v1130
    %1178 = vmatprep.subr.bf16.mxu0 0
    %1179 = vmatpush1.bf16.msra.mxu0 %v1131
    %1180 = vmatprep.mubr.bf16.mxu0 %v1019
    %1181 = vmatmul.mubr.bf16.gmra.mrb[0].mxu0 %v1018
    %v1182 = vpop.f32.mrb[0].mxu0
    %v1183 = vadd.f32 0.0, %v1182
    %v1184 = vpop.f32.mrb[0].mxu0
    %v1185 = vpop.f32.mrb[0].mxu0
    %v1186 = vpop.f32.mrb[0].mxu0
    %1187 = vdwg.mxu0
    %1188 = vst [vmem:[#allocation5] sm:$0x3] %v1183
    // Predicated region
    $region18: #{dnn_forward.1} parent=1 // pred_check
      _
    $region19: #{dnn_forward.1} parent=1 // pred_check_branch
      %1190 = sbr.rel (0) target = $region21
    $region20: #{dnn_forward.1} parent=1 // pred_region
      %s1192 = ssub.s32 32, 32
      %1193 = vsyncadd [#allocation4], %s1192
      %s1195 = sshll.u32 [#allocation5], 4
      %s1196 = int_to_ptr.vmem [resolvable:$true] %s1195
      %1198 = dma.vmem_to_hbm [thread:$0]  %s1196, 32, %s3, [#allocation4]
    $region21: #{dnn_forward.1} parent=1 // pred_fallthru
      _
    // Predicated region
    $region22: #{dnn_forward.1} parent=1 // pred_check
      _
    $region23: #{dnn_forward.1} parent=1 // pred_check_branch
      %1200 = sbr.rel (0) target = $region25
    $region24: #{dnn_forward.1} parent=1 // pred_region
      %1201 = dma.done [#allocation4], 32
    $region25: #{dnn_forward.1} parent=1 // pred_fallthru
      _
    %1202 = vsyncpa [#allocation3], 1
    %1203 = vsyncpa [#allocation4], 1

</llo_original>
